<compile_context>
chip_gen: v7x
topology: tpu7x:2x2x1
jax: 0.10.0
libtpu: 0.0.40
codegen_flags: <defaults>
</compile_context>

<pallas_src>
import jax
import jax.numpy as jnp
from jax.experimental import pallas as pl
from jax.experimental.pallas import tpu as pltpu


def _round_up(v, m):
    return ((v + m - 1) // m) * m


def _linear_lora_kernel(x_ref, w_ref, b_ref, xa_ref, bs_ref, o_ref, acc_ref):
    """Grid = (M tiles, N tiles, K tiles); K is the innermost reduction axis."""
    k = pl.program_id(2)

    @pl.when(k == 0)
    def _():
        acc_ref[...] = jnp.zeros_like(acc_ref)

    # Base path: (tm, tk) @ (tk, tn) -> (tm, tn).  W was pre-transposed to
    # (K, N) in the wrapper, so no in-kernel transpose is needed.
    acc_ref[...] += jnp.dot(x_ref[...], w_ref[...],
                            preferred_element_type=jnp.float32)

    # Epilogue (once per output tile): rank-r up-projection + bias.
    @pl.when(k == pl.num_programs(2) - 1)
    def _():
        lora = jnp.dot(xa_ref[...], bs_ref[...],
                       preferred_element_type=jnp.float32)       # (tm, tn)
        o_ref[...] = (acc_ref[...] + b_ref[...] + lora).astype(o_ref.dtype)


def linear_with_lora(x, w, bias, A, B, alpha):
    """x: (M, in); w: (out, in) torch layout; bias: (out,); A: (in, r); B: (r, out)."""
    M, K = x.shape
    N, K_w = w.shape
    assert K == K_w
    r = A.shape[1]
    r_pad = _round_up(r, 8)                  # sublane-friendly rank padding

    # Lane-dense, MXU-friendly tiles; clamped so small shapes still work.
    tm = min(256, _round_up(M, 8))
    tn = min(512, _round_up(N, 128))
    tk = min(1024, _round_up(K, 128))
    M_pad = _round_up(M, tm)
    N_pad = _round_up(N, tn)
    K_pad = _round_up(K, tk)

    def pad2(a, s0, s1):
        if a.shape == (s0, s1):
            return a
        return jnp.pad(a, ((0, s0 - a.shape[0]), (0, s1 - a.shape[1])))

    x_p = pad2(x, M_pad, K_pad)
    # One-time transpose of the static weight to (K, N): plain dot in-kernel.
    w_t = pad2(w.T, K_pad, N_pad)
    bias_p = bias if N_pad == N else jnp.pad(bias, (0, N_pad - N))
    bias2d = bias_p.reshape(1, N_pad)

    # Hoisted LoRA down-projection (rank-r, cheap in XLA) + alpha folded into B.
    xa = pad2(x @ A, M_pad, r_pad)                                  # (M_pad, r_pad)
    b_scaled = pad2(jnp.asarray(alpha, B.dtype) * B, r_pad, N_pad)  # (r_pad, N_pad)

    grid = (M_pad // tm, N_pad // tn, K_pad // tk)

    # VMEM budget derived from the double-buffered working set (+ headroom),
    # instead of a blanket constant; keeps v7x (64 MiB/TC) happy.
    bytes_per = 4
    tile_bytes = (tm * tk + tk * tn + tm * tn           # x, W, out tiles
                  + tm * r_pad + r_pad * tn + tn) * bytes_per
    vmem_limit = min(64 * 1024 * 1024,
                     max(16 * 1024 * 1024,
                         2 * tile_bytes + tm * tn * bytes_per + 8 * 1024 * 1024))

    cost = pl.CostEstimate(
        flops=2 * M_pad * N_pad * K_pad + 2 * M_pad * N_pad * r_pad,
        transcendentals=0,
        bytes_accessed=bytes_per * (M_pad * K_pad + K_pad * N_pad + N_pad
                                    + M_pad * r_pad + r_pad * N_pad
                                    + M_pad * N_pad),
    )

    out = pl.pallas_call(
        _linear_lora_kernel,
        out_shape=jax.ShapeDtypeStruct((M_pad, N_pad), x.dtype),
        grid_spec=pltpu.PrefetchScalarGridSpec(
            num_scalar_prefetch=0,
            grid=grid,
            in_specs=[
                pl.BlockSpec((tm, tk), lambda i, j, k: (i, k)),     # x
                pl.BlockSpec((tk, tn), lambda i, j, k: (k, j)),     # W^T (K, N)
                pl.BlockSpec((1, tn), lambda i, j, k: (0, j)),      # bias row
                pl.BlockSpec((tm, r_pad), lambda i, j, k: (i, 0)),  # x @ A
                pl.BlockSpec((r_pad, tn), lambda i, j, k: (0, j)),  # alpha * B
            ],
            out_specs=pl.BlockSpec((tm, tn), lambda i, j, k: (i, j)),
            scratch_shapes=[
                pltpu.VMEM((tm, tn), jnp.float32),   # f32 accumulator
            ],
        ),
        compiler_params=pltpu.CompilerParams(
            dimension_semantics=("parallel", "parallel", "arbitrary"),
            vmem_limit_bytes=int(vmem_limit),
        ),
        cost_estimate=cost,
    )(x_p, w_t, bias2d, xa, b_scaled)

    return out[:M, :N]


if __name__ == "__main__":
    # Shapes consistent with nn.Linear(in_features=32, out_features=64), rank=4.
    batch, in_dim, out_dim, rank = 8, 32, 64, 4
    alpha = 2.0

    key = jax.random.PRNGKey(0)
    kx, kw, kb, ka, kbm = jax.random.split(key, 5)

    x = jax.random.normal(kx, (batch, in_dim), dtype=jnp.float32)
    w = jax.random.normal(kw, (out_dim, in_dim), dtype=jnp.float32) * 0.05
    bias = jax.random.normal(kb, (out_dim,), dtype=jnp.float32) * 0.05
    std_dev = 1.0 / jnp.sqrt(jnp.float32(rank))
    A = jax.random.normal(ka, (in_dim, rank), dtype=jnp.float32) * std_dev
    # NOTE: torch init sets B = zeros; random B here so the LoRA path is exercised.
    B = jax.random.normal(kbm, (rank, out_dim), dtype=jnp.float32) * std_dev

    out = linear_with_lora(x, w, bias, A, B, alpha)
    out = jax.block_until_ready(out)

    # Pure-JAX reference.
    ref = x @ w.T + bias + alpha * ((x @ A) @ B)
    assert out.shape == (batch, out_dim)
    assert jnp.allclose(out, ref, atol=1e-4, rtol=1e-4)

    print("KERNEL_OK")
</pallas_src>

<mosaic_0001>
module attributes {stable_mosaic.version = 11 : i64} {
  func.func @_linear_lora_kernel(%arg0: i32, %arg1: i32, %arg2: i32, %arg3: memref<8x128xf32, #tpu.memory_space<vmem>>, %arg4: memref<128x128xf32, #tpu.memory_space<vmem>>, %arg5: memref<1x128xf32, #tpu.memory_space<vmem>>, %arg6: memref<8x8xf32, #tpu.memory_space<vmem>>, %arg7: memref<8x128xf32, #tpu.memory_space<vmem>>, %arg8: memref<8x128xf32, #tpu.memory_space<vmem>>, %arg9: memref<8x128xf32, #tpu.memory_space<vmem>>) attributes {dimension_semantics = [#tpu.dimension_semantics<parallel>, #tpu.dimension_semantics<parallel>, #tpu.dimension_semantics<arbitrary>], iteration_bounds = array<i64: 1, 1, 1>, scalar_prefetch = 0 : i64, scratch_operands = 1 : i64, tpu.core_type = #tpu.core_type<tc>, window_params = [{transform_indices = @transform_0, window_bounds = array<i64: 8, 128>}, {transform_indices = @transform_1, window_bounds = array<i64: 128, 128>}, {transform_indices = @transform_2, window_bounds = array<i64: 1, 128>}, {transform_indices = @transform_3, window_bounds = array<i64: 8, 8>}, {transform_indices = @transform_4, window_bounds = array<i64: 8, 128>}, {transform_indices = @transform_5, window_bounds = array<i64: 8, 128>}]} {
    %c0_i32 = arith.constant 0 : i32
    %0 = arith.cmpi eq, %arg2, %c0_i32 : i32
    %1 = arith.extui %0 : i1 to i32
    %c0_i32_0 = arith.constant 0 : i32
    %2 = arith.cmpi ne, %1, %c0_i32_0 : i32
    scf.if %2 {
      %cst_10 = arith.constant 0.000000e+00 : f32
      %12 = vector.broadcast %cst_10 : f32 to vector<8x128xf32>
      %c0_11 = arith.constant 0 : index
      %c0_12 = arith.constant 0 : index
      %13 = vector.load %arg9[%c0_11, %c0_12] : memref<8x128xf32, #tpu.memory_space<vmem>>, vector<8x128xf32>
      tpu.vector_store %arg9[%c0_11, %c0_12], %12 {strides = array<i32>} : memref<8x128xf32, #tpu.memory_space<vmem>>, vector<8x128xf32>,
    } else {
    }
    %c0 = arith.constant 0 : index
    %c0_1 = arith.constant 0 : index
    %3 = vector.load %arg9[%c0, %c0_1] : memref<8x128xf32, #tpu.memory_space<vmem>>, vector<8x128xf32>
    %c0_2 = arith.constant 0 : index
    %c0_3 = arith.constant 0 : index
    %4 = vector.load %arg3[%c0_2, %c0_3] : memref<8x128xf32, #tpu.memory_space<vmem>>, vector<8x128xf32>
    %c0_4 = arith.constant 0 : index
    %c0_5 = arith.constant 0 : index
    %5 = vector.load %arg4[%c0_4, %c0_5] : memref<128x128xf32, #tpu.memory_space<vmem>>, vector<128x128xf32>
    %cst = arith.constant dense<0.000000e+00> : vector<8x128xf32>
    %6 = tpu.matmul %4, %5, %cst {dimension_numbers = #tpu.dot_dimension_numbers<[1], [0], [0], [1], [0, 0, 1, 1], [], []>} : vector<8x128xf32>, vector<128x128xf32>, vector<8x128xf32> -> vector<8x128xf32>
    %7 = arith.addf %3, %6 : vector<8x128xf32>
    %c0_6 = arith.constant 0 : index
    %c0_7 = arith.constant 0 : index
    %8 = vector.load %arg9[%c0_6, %c0_7] : memref<8x128xf32, #tpu.memory_space<vmem>>, vector<8x128xf32>
    tpu.vector_store %arg9[%c0_6, %c0_7], %7 {strides = array<i32>} : memref<8x128xf32, #tpu.memory_space<vmem>>, vector<8x128xf32>,
    %c0_i32_8 = arith.constant 0 : i32
    %9 = arith.cmpi eq, %arg2, %c0_i32_8 : i32
    %10 = arith.extui %9 : i1 to i32
    %c0_i32_9 = arith.constant 0 : i32
    %11 = arith.cmpi ne, %10, %c0_i32_9 : i32
    scf.if %11 {
      %c0_10 = arith.constant 0 : index
      %c0_11 = arith.constant 0 : index
      %12 = vector.load %arg6[%c0_10, %c0_11] : memref<8x8xf32, #tpu.memory_space<vmem>>, vector<8x8xf32>
      %c0_12 = arith.constant 0 : index
      %c0_13 = arith.constant 0 : index
      %13 = vector.load %arg7[%c0_12, %c0_13] : memref<8x128xf32, #tpu.memory_space<vmem>>, vector<8x128xf32>
      %cst_14 = arith.constant dense<0.000000e+00> : vector<8x128xf32>
      %14 = tpu.matmul %12, %13, %cst_14 {dimension_numbers = #tpu.dot_dimension_numbers<[1], [0], [0], [1], [0, 0, 1, 1], [], []>} : vector<8x8xf32>, vector<8x128xf32>, vector<8x128xf32> -> vector<8x128xf32>
      %c0_15 = arith.constant 0 : index
      %c0_16 = arith.constant 0 : index
      %15 = vector.load %arg9[%c0_15, %c0_16] : memref<8x128xf32, #tpu.memory_space<vmem>>, vector<8x128xf32>
      %c0_17 = arith.constant 0 : index
      %c0_18 = arith.constant 0 : index
      %16 = vector.load %arg5[%c0_17, %c0_18] : memref<1x128xf32, #tpu.memory_space<vmem>>, vector<1x128xf32>
      %17 = vector.broadcast %16 : vector<1x128xf32> to vector<8x128xf32>
      %18 = arith.addf %15, %17 : vector<8x128xf32>
      %19 = arith.addf %18, %14 : vector<8x128xf32>
      %c0_19 = arith.constant 0 : index
      %c0_20 = arith.constant 0 : index
      %20 = vector.load %arg8[%c0_19, %c0_20] : memref<8x128xf32, #tpu.memory_space<vmem>>, vector<8x128xf32>
      tpu.vector_store %arg8[%c0_19, %c0_20], %19 {strides = array<i32>} : memref<8x128xf32, #tpu.memory_space<vmem>>, vector<8x128xf32>,
    } else {
    }
    return
  }
  func.func @transform_0(%arg0: i32, %arg1: i32, %arg2: i32) -> (i32, i32) {
    %c0_i32 = arith.constant 0 : i32
    return %arg0, %arg2 : i32, i32
  }
  func.func @transform_1(%arg0: i32, %arg1: i32, %arg2: i32) -> (i32, i32) {
    %c0_i32 = arith.constant 0 : i32
    return %arg2, %arg1 : i32, i32
  }
  func.func @transform_2(%arg0: i32, %arg1: i32, %arg2: i32) -> (i32, i32) {
    %c0_i32 = arith.constant 0 : i32
    %c0_i32_0 = arith.constant 0 : i32
    return %c0_i32, %arg1 : i32, i32
  }
  func.func @transform_3(%arg0: i32, %arg1: i32, %arg2: i32) -> (i32, i32) {
    %c0_i32 = arith.constant 0 : i32
    %c0_i32_0 = arith.constant 0 : i32
    return %arg0, %c0_i32 : i32, i32
  }
  func.func @transform_4(%arg0: i32, %arg1: i32, %arg2: i32) -> (i32, i32) {
    %c0_i32 = arith.constant 0 : i32
    %c0_i32_0 = arith.constant 0 : i32
    return %c0_i32, %arg1 : i32, i32
  }
  func.func @transform_5(%arg0: i32, %arg1: i32, %arg2: i32) -> (i32, i32) {
    %c0_i32 = arith.constant 0 : i32
    return %arg0, %arg1 : i32, i32
  }
}

</mosaic_0001>

<llo_original>
// kernel: tpu_custom_call.1
$region0: #{tpu_custom_call.1}
  #allocation0 [shape = 'u32[]', space=smem, size = 0x4, offset = 0x4, fixed_abs, tag = 'smem constant byte address 0x4 - core index']
  #allocation1 [shape = 'u32[144,128]{1,0:T(1,128)}', space=vmem, size = 0x12000, scoped, tag = 'internal scratch']
  #allocation2 [shape = 'f32[8,128]{1,0:T(8,128)}', space=vmem, size = 0x1000, scoped, tag = 'scratch operand']
  %s0 = inlined_call_operand.hbm [shape: f32[8,128], index: 0, kind: input, shape index: {}]
  %s1 = inlined_call_operand.hbm [shape: f32[128,128], index: 1, kind: input, shape index: {}]
  %s2 = inlined_call_operand.vmem [shape: f32[1,128], index: 2, kind: input, shape index: {}]
  %s3 = inlined_call_operand.vmem [shape: f32[8,8], index: 3, kind: input, shape index: {}]
  %s4 = inlined_call_operand.hbm [shape: f32[8,128], index: 4, kind: input, shape index: {}]
  %s5 = inlined_call_operand.hbm [shape: f32[8,128], index: 5, kind: output, shape index: {}]
  %s6 = sld [smem:[#allocation0]]
  $region50: #{tpu_custom_call.1} parent=0
    _
  %s8 = ssub.s32 1, %s6
  %s9 = scalar_select 0, %s8, %s6
  $region1: #{tpu_custom_call.1} parent=0
    #allocation3 [shape = 'u8[4096]{0}', space=vmem, size = 0x1000, scoped, tag = 'input window, operand 0, single buffered']
    #allocation4 [shape = 's32[1]{0}', space=sflag, size = 0x4, scoped, tag = 'scoped memory for tpu_custom_call.1']
    #allocation5 [shape = 's32[1]{0}', space=sflag, size = 0x4, scoped, tag = 'scoped memory for tpu_custom_call.1']
    #allocation6 [shape = 'u8[65536]{0}', space=vmem, size = 0x10000, scoped, tag = 'input window, operand 1, single buffered']
    #allocation7 [shape = 's32[1]{0}', space=sflag, size = 0x4, scoped, tag = 'scoped memory for tpu_custom_call.1']
    #allocation8 [shape = 'u8[4096]{0}', space=vmem, size = 0x1000, scoped, tag = 'input window, operand 4, single buffered']
    #allocation9 [shape = 'u8[4096]{0}', space=vmem, size = 0x1000, scoped, tag = 'output window, operand 0, single buffered']
    %10 = vsyncpa [#allocation4], 0
    %11 = vsyncpa [#allocation7], 0
    %12 = vsyncpa [#allocation5], 0
    // Predicated region
    $region2: #{tpu_custom_call.1} parent=1 // pred_check
      _
    $region3: #{tpu_custom_call.1} parent=1 // pred_check_branch
      %14 = sbr.rel (0) target = $region5
    $region4: #{tpu_custom_call.1} parent=1 // pred_region
      %s16 = ssub.s32 128, 128
      %17 = vsyncadd [#allocation4], %s16
      %s19 = sshll.u32 [#allocation3], 4
      %s20 = int_to_ptr.vmem [resolvable:$true] %s19
      %22 = dma.hbm_to_vmem [thread:$0]  %s0, 128, %s20, [#allocation4]
    $region5: #{tpu_custom_call.1} parent=1 // pred_fallthru
      _
    // Predicated region
    $region6: #{tpu_custom_call.1} parent=1 // pred_check
      _
    $region7: #{tpu_custom_call.1} parent=1 // pred_check_branch
      %24 = sbr.rel (0) target = $region9
    $region8: #{tpu_custom_call.1} parent=1 // pred_region
      %s26 = ssub.s32 2048, 2048
      %27 = vsyncadd [#allocation7], %s26
      %s28 = sshll.u32 [#allocation6], 4
      %s29 = int_to_ptr.vmem [resolvable:$true] %s28
      %34 = dma.hbm_to_vmem [thread:$0]  %s1, 2048, %s29, [#allocation7], 128, 128, 8
    $region9: #{tpu_custom_call.1} parent=1 // pred_fallthru
      _
    // Predicated region
    $region10: #{tpu_custom_call.1} parent=1 // pred_check
      _
    $region11: #{tpu_custom_call.1} parent=1 // pred_check_branch
      %36 = sbr.rel (0) target = $region13
    $region12: #{tpu_custom_call.1} parent=1 // pred_region
      _
    $region13: #{tpu_custom_call.1} parent=1 // pred_fallthru
      _
    // Predicated region
    $region14: #{tpu_custom_call.1} parent=1 // pred_check
      _
    $region15: #{tpu_custom_call.1} parent=1 // pred_check_branch
      %38 = sbr.rel (0) target = $region17
    $region16: #{tpu_custom_call.1} parent=1 // pred_region
      _
    $region17: #{tpu_custom_call.1} parent=1 // pred_fallthru
      _
    // Predicated region
    $region18: #{tpu_custom_call.1} parent=1 // pred_check
      _
    $region19: #{tpu_custom_call.1} parent=1 // pred_check_branch
      %40 = sbr.rel (0) target = $region21
    $region20: #{tpu_custom_call.1} parent=1 // pred_region
      %s42 = ssub.s32 128, 128
      %43 = vsyncadd [#allocation7], %s42
      %s45 = sshll.u32 [#allocation8], 4
      %s46 = int_to_ptr.vmem [resolvable:$true] %s45
      %48 = dma.hbm_to_vmem [thread:$0]  %s4, 128, %s46, [#allocation7]
    $region21: #{tpu_custom_call.1} parent=1 // pred_fallthru
      _
    // Predicated region
    $region22: #{tpu_custom_call.1} parent=1 // pred_check
      _
    $region23: #{tpu_custom_call.1} parent=1 // pred_check_branch
      %50 = sbr.rel (0) target = $region25
    $region24: #{tpu_custom_call.1} parent=1 // pred_region
      %51 = dma.done [#allocation4], 128
    $region25: #{tpu_custom_call.1} parent=1 // pred_fallthru
      _
    // Predicated region
    $region26: #{tpu_custom_call.1} parent=1 // pred_check
      _
    $region27: #{tpu_custom_call.1} parent=1 // pred_check_branch
      %53 = sbr.rel (0) target = $region29
    $region28: #{tpu_custom_call.1} parent=1 // pred_region
      %54 = dma.done [#allocation7], 2048
    $region29: #{tpu_custom_call.1} parent=1 // pred_fallthru
      _
    // Predicated region
    $region30: #{tpu_custom_call.1} parent=1 // pred_check
      _
    $region31: #{tpu_custom_call.1} parent=1 // pred_check_branch
      %56 = sbr.rel (0) target = $region33
    $region32: #{tpu_custom_call.1} parent=1 // pred_region
      %57 = dma.done [#allocation7], 128
    $region33: #{tpu_custom_call.1} parent=1 // pred_fallthru
      _
    %p58 = scmp.eq.s32.totalorder 0, 0
    // Predicated region
    $region34: #{tpu_custom_call.1} parent=1 // pred_check
      %p59 = pneg %p58
    $region35: #{tpu_custom_call.1} parent=1 // pred_check_branch
      %61 = sbr.rel (%p59) target = $region37
    $region36: #{tpu_custom_call.1} parent=1 // pred_region
      %62 = vst [vmem:[#allocation2] sm:$0xff] 0.0
    $region37: #{tpu_custom_call.1} parent=1 // pred_fallthru
      _
    %v63 = vld [vmem:[#allocation2] sm:$0xff]
    %v64 = vld [vmem:[#allocation3] sm:$0xff]
    %v65 = vld [vmem:[#allocation6] sm:$0xff]
    %v66 = vld [vmem:[#allocation6 + $0x8] sm:$0xff]
    %v67 = vld [vmem:[#allocation6 + $0x10] sm:$0xff]
    %v68 = vld [vmem:[#allocation6 + $0x18] sm:$0xff]
    %v69 = vld [vmem:[#allocation6 + $0x20] sm:$0xff]
    %v70 = vld [vmem:[#allocation6 + $0x28] sm:$0xff]
    %v71 = vld [vmem:[#allocation6 + $0x30] sm:$0xff]
    %v72 = vld [vmem:[#allocation6 + $0x38] sm:$0xff]
    %v73 = vld [vmem:[#allocation6 + $0x40] sm:$0xff]
    %v74 = vld [vmem:[#allocation6 + $0x48] sm:$0xff]
    %v75 = vld [vmem:[#allocation6 + $0x50] sm:$0xff]
    %v76 = vld [vmem:[#allocation6 + $0x58] sm:$0xff]
    %v77 = vld [vmem:[#allocation6 + $0x60] sm:$0xff]
    %v78 = vld [vmem:[#allocation6 + $0x68] sm:$0xff]
    %v79 = vld [vmem:[#allocation6 + $0x70] sm:$0xff]
    %v80 = vld [vmem:[#allocation6 + $0x78] sm:$0xff]
    %81 = vmatprep.subr.mxu0 0.0
    %82 = vmatpush1.msra.mxu0 %v65
    %83 = vmatprep.subr.mxu0 0.0
    %84 = vmatpush1.msra.mxu0 %v66
    %85 = vmatprep.subr.mxu0 0.0
    %86 = vmatpush1.msra.mxu0 %v67
    %87 = vmatprep.subr.mxu0 0.0
    %88 = vmatpush1.msra.mxu0 %v68
    %89 = vmatprep.subr.mxu0 0.0
    %90 = vmatpush1.msra.mxu0 %v69
    %91 = vmatprep.subr.mxu0 0.0
    %92 = vmatpush1.msra.mxu0 %v70
    %93 = vmatprep.subr.mxu0 0.0
    %94 = vmatpush1.msra.mxu0 %v71
    %95 = vmatprep.subr.mxu0 0.0
    %96 = vmatpush1.msra.mxu0 %v72
    %97 = vmatprep.subr.mxu0 0.0
    %98 = vmatpush1.msra.mxu0 %v73
    %99 = vmatprep.subr.mxu0 0.0
    %100 = vmatpush1.msra.mxu0 %v74
    %101 = vmatprep.subr.mxu0 0.0
    %102 = vmatpush1.msra.mxu0 %v75
    %103 = vmatprep.subr.mxu0 0.0
    %104 = vmatpush1.msra.mxu0 %v76
    %105 = vmatprep.subr.mxu0 0.0
    %106 = vmatpush1.msra.mxu0 %v77
    %107 = vmatprep.subr.mxu0 0.0
    %108 = vmatpush1.msra.mxu0 %v78
    %109 = vmatprep.subr.mxu0 0.0
    %110 = vmatpush1.msra.mxu0 %v79
    %111 = vmatprep.subr.mxu0 0.0
    %112 = vmatpush1.msra.mxu0 %v80
    %113 = vmatprep.subr.mxu0 0.0
    %114 = vmatpush1.msra.mxu0 0.0
    %115 = vmatprep.subr.mxu0 0.0
    %116 = vmatpush1.msra.mxu0 0.0
    %117 = vmatprep.subr.mxu0 0.0
    %118 = vmatpush1.msra.mxu0 0.0
    %119 = vmatprep.subr.mxu0 0.0
    %120 = vmatpush1.msra.mxu0 0.0
    %121 = vmatprep.subr.mxu0 0.0
    %122 = vmatpush1.msra.mxu0 0.0
    %123 = vmatprep.subr.mxu0 0.0
    %124 = vmatpush1.msra.mxu0 0.0
    %125 = vmatprep.subr.mxu0 0.0
    %126 = vmatpush1.msra.mxu0 0.0
    %127 = vmatprep.subr.mxu0 0.0
    %128 = vmatpush1.msra.mxu0 0.0
    %129 = vmatprep.subr.mxu0 0.0
    %130 = vmatpush1.msra.mxu0 0.0
    %131 = vmatprep.subr.mxu0 0.0
    %132 = vmatpush1.msra.mxu0 0.0
    %133 = vmatprep.subr.mxu0 0.0
    %134 = vmatpush1.msra.mxu0 0.0
    %135 = vmatprep.subr.mxu0 0.0
    %136 = vmatpush1.msra.mxu0 0.0
    %137 = vmatprep.subr.mxu0 0.0
    %138 = vmatpush1.msra.mxu0 0.0
    %139 = vmatprep.subr.mxu0 0.0
    %140 = vmatpush1.msra.mxu0 0.0
    %141 = vmatprep.subr.mxu0 0.0
    %142 = vmatpush1.msra.mxu0 0.0
    %143 = vmatprep.subr.mxu0 0.0
    %144 = vmatpush1.msra.mxu0 0.0
    %145 = vmatprep.mubr.f32.mxu0 0.0
    %146 = vmatmul.mubr.f32.gmra.mrb[0].mxu0 %v64
    %v147 = vpop.f32.mrb[0].mxu0
    %v148 = vadd.f32 0.0, %v147
    %v149 = vpop.f32.mrb[0].mxu0
    %150 = vdwg.mxu0
    %v151 = vadd.f32 %v63, %v148
    %152 = vst [vmem:[#allocation2] sm:$0xff] %v151
    // Predicated region
    $region38: #{tpu_custom_call.1} parent=1 // pred_check
      %p153 = pneg %p58
    $region39: #{tpu_custom_call.1} parent=1 // pred_check_branch
      %155 = sbr.rel (%p153) target = $region41
    $region40: #{tpu_custom_call.1} parent=1 // pred_region
      %v156 = vld [vmem:[%s3] sm:$0xff]
      %v157 = vld [vmem:[#allocation8] sm:$0xff]
      %vm158 = vcmask 64512
      %v160 = vsel %vm158, %v156, 0
      %162 = vmatprep.subr.mxu0 0.0
      %163 = vmatpush1.msra.mxu0 %v157
      %164 = vmatprep.subr.mxu0 0.0
      %165 = vmatpush1.msra.mxu0 0.0
      %166 = vmatprep.subr.mxu0 0.0
      %167 = vmatpush1.msra.mxu0 0.0
      %168 = vmatprep.subr.mxu0 0.0
      %169 = vmatpush1.msra.mxu0 0.0
      %170 = vmatprep.subr.mxu0 0.0
      %171 = vmatpush1.msra.mxu0 0.0
      %172 = vmatprep.subr.mxu0 0.0
      %173 = vmatpush1.msra.mxu0 0.0
      %174 = vmatprep.subr.mxu0 0.0
      %175 = vmatpush1.msra.mxu0 0.0
      %176 = vmatprep.subr.mxu0 0.0
      %177 = vmatpush1.msra.mxu0 0.0
      %178 = vmatprep.subr.mxu0 0.0
      %179 = vmatpush1.msra.mxu0 0.0
      %180 = vmatprep.subr.mxu0 0.0
      %181 = vmatpush1.msra.mxu0 0.0
      %182 = vmatprep.subr.mxu0 0.0
      %183 = vmatpush1.msra.mxu0 0.0
      %184 = vmatprep.subr.mxu0 0.0
      %185 = vmatpush1.msra.mxu0 0.0
      %186 = vmatprep.subr.mxu0 0.0
      %187 = vmatpush1.msra.mxu0 0.0
      %188 = vmatprep.subr.mxu0 0.0
      %189 = vmatpush1.msra.mxu0 0.0
      %190 = vmatprep.subr.mxu0 0.0
      %191 = vmatpush1.msra.mxu0 0.0
      %192 = vmatprep.subr.mxu0 0.0
      %193 = vmatpush1.msra.mxu0 0.0
      %194 = vmatprep.subr.mxu0 0.0
      %195 = vmatpush1.msra.mxu0 0.0
      %196 = vmatprep.subr.mxu0 0.0
      %197 = vmatpush1.msra.mxu0 0.0
      %198 = vmatprep.subr.mxu0 0.0
      %199 = vmatpush1.msra.mxu0 0.0
      %200 = vmatprep.subr.mxu0 0.0
      %201 = vmatpush1.msra.mxu0 0.0
      %202 = vmatprep.subr.mxu0 0.0
      %203 = vmatpush1.msra.mxu0 0.0
      %204 = vmatprep.subr.mxu0 0.0
      %205 = vmatpush1.msra.mxu0 0.0
      %206 = vmatprep.subr.mxu0 0.0
      %207 = vmatpush1.msra.mxu0 0.0
      %208 = vmatprep.subr.mxu0 0.0
      %209 = vmatpush1.msra.mxu0 0.0
      %210 = vmatprep.subr.mxu0 0.0
      %211 = vmatpush1.msra.mxu0 0.0
      %212 = vmatprep.subr.mxu0 0.0
      %213 = vmatpush1.msra.mxu0 0.0
      %214 = vmatprep.subr.mxu0 0.0
      %215 = vmatpush1.msra.mxu0 0.0
      %216 = vmatprep.subr.mxu0 0.0
      %217 = vmatpush1.msra.mxu0 0.0
      %218 = vmatprep.subr.mxu0 0.0
      %219 = vmatpush1.msra.mxu0 0.0
      %220 = vmatprep.subr.mxu0 0.0
      %221 = vmatpush1.msra.mxu0 0.0
      %222 = vmatprep.subr.mxu0 0.0
      %223 = vmatpush1.msra.mxu0 0.0
      %224 = vmatprep.subr.mxu0 0.0
      %225 = vmatpush1.msra.mxu0 0.0
      %226 = vmatprep.mubr.f32.mxu0 0.0
      %227 = vmatmul.mubr.f32.gmra.mrb[0].mxu0 %v160
      %v228 = vpop.f32.mrb[0].mxu0
      %v229 = vadd.f32 0.0, %v228
      %v230 = vpop.f32.mrb[0].mxu0
      %231 = vdwg.mxu0
      %v232 = vld [vmem:[#allocation2] sm:$0xff]
      %v233 = vld [vmem:[%s2] sm:$0x1]
      %v235 = vlaneseq
      %v236 = vshrl.u32 %v235, 7
      %v237 = vsub.s32 0, %v236
      %v238 = vrot.slane %v233, %v237
      %v240 = vadd.f32 %v232, %v238
      %v241 = vadd.f32 %v240, %v229
      %242 = vst [vmem:[#allocation9] sm:$0xff] %v241
    $region41: #{tpu_custom_call.1} parent=1 // pred_fallthru
      _
    // Predicated region
    $region42: #{tpu_custom_call.1} parent=1 // pred_check
      _
    $region43: #{tpu_custom_call.1} parent=1 // pred_check_branch
      %244 = sbr.rel (0) target = $region45
    $region44: #{tpu_custom_call.1} parent=1 // pred_region
      %s246 = ssub.s32 128, 128
      %247 = vsyncadd [#allocation5], %s246
      %s249 = sshll.u32 [#allocation9], 4
      %s250 = int_to_ptr.vmem [resolvable:$true] %s249
      %252 = dma.vmem_to_hbm [thread:$0]  %s250, 128, %s5, [#allocation5]
    $region45: #{tpu_custom_call.1} parent=1 // pred_fallthru
      _
    // Predicated region
    $region46: #{tpu_custom_call.1} parent=1 // pred_check
      _
    $region47: #{tpu_custom_call.1} parent=1 // pred_check_branch
      %254 = sbr.rel (0) target = $region49
    $region48: #{tpu_custom_call.1} parent=1 // pred_region
      %255 = dma.done [#allocation5], 128
    $region49: #{tpu_custom_call.1} parent=1 // pred_fallthru
      _
    %256 = vsyncpa [#allocation4], 1
    %257 = vsyncpa [#allocation7], 1
    %258 = vsyncpa [#allocation5], 1

</llo_original>
